<compile_context>
chip_gen: v7x
topology: tpu7x:2x2x1
jax: 0.10.0
libtpu: 0.0.40
codegen_flags: <defaults>
</compile_context>

<pallas_src>
import jax
import jax.numpy as jnp
from jax.experimental import pallas as pl
from jax.experimental.pallas import tpu as pltpu


# ----------------------------------------------------------------------------
# Fused kernel: all three layers on a VMEM-resident activation.
# ----------------------------------------------------------------------------
def _fused_mlp_kernel(z_ref, w1_ref, b1_ref, u2_ref, v2_ref, b2_ref,
                      w3_ref, b3_ref, o_ref):
    # layer_1_dense_relu:  h = relu(Z @ W1 + b1)
    z = z_ref[...].astype(jnp.bfloat16)
    h = jnp.dot(z, w1_ref[...], preferred_element_type=jnp.float32)
    h = jnp.maximum(h + b1_ref[...], 0.0)

    # layer_2_lowrank_relu:  h2 = relu((h @ U2) @ V2 + b2)
    t = jnp.dot(h.astype(jnp.bfloat16), u2_ref[...],
                preferred_element_type=jnp.float32)
    h2 = jnp.dot(t.astype(jnp.bfloat16), v2_ref[...],
                 preferred_element_type=jnp.float32)
    h2 = jnp.maximum(h2 + b2_ref[...], 0.0)

    # layer_3_dense_linear:  out = h2 @ W3 + b3
    out = jnp.dot(h2.astype(jnp.bfloat16), w3_ref[...],
                  preferred_element_type=jnp.float32)
    out = out + b3_ref[...]
    o_ref[...] = out.astype(o_ref.dtype)


# ----------------------------------------------------------------------------
# Wrapper (pallas_call plumbing): batch grid, weights resident across tiles.
# ----------------------------------------------------------------------------
def _round_up(x, m):
    return ((x + m - 1) // m) * m


def fused_mlp(z, params, *, max_block_m=512):
    B, K = z.shape
    H1 = params["w1"].shape[1]
    R = params["u2"].shape[1]
    H2 = params["v2"].shape[1]
    N = params["w3"].shape[1]

    # Batch tile: at least 8 (fp32 sublane quantum), at most max_block_m rows.
    tm = min(max_block_m, _round_up(B, 8))
    Bp = _round_up(B, tm)
    if Bp != B:
        z = jnp.pad(z, ((0, Bp - B), (0, 0)))
    grid = (Bp // tm,)

    flops = 2 * Bp * (K * H1 + H1 * R + R * H2 + H2 * N)
    weight_bytes = 2 * (K * H1 + H1 * R + R * H2 + H2 * N)           # bf16
    bias_bytes = 4 * (H1 + H2 + N)                                    # fp32
    act_bytes = 4 * Bp * (K + N)                                      # in + out
    cost = pl.CostEstimate(flops=flops, transcendentals=0,
                           bytes_accessed=weight_bytes + bias_bytes + act_bytes)

    out = pl.pallas_call(
        _fused_mlp_kernel,
        out_shape=jax.ShapeDtypeStruct((Bp, N), jnp.float32),
        grid=grid,
        in_specs=[
            pl.BlockSpec((tm, K), lambda i: (i, 0)),        # activations: per tile
            pl.BlockSpec((K, H1), lambda i: (0, 0)),        # weights: resident
            pl.BlockSpec((1, H1), lambda i: (0, 0)),
            pl.BlockSpec((H1, R), lambda i: (0, 0)),
            pl.BlockSpec((R, H2), lambda i: (0, 0)),
            pl.BlockSpec((1, H2), lambda i: (0, 0)),
            pl.BlockSpec((H2, N), lambda i: (0, 0)),
            pl.BlockSpec((1, N), lambda i: (0, 0)),
        ],
        out_specs=pl.BlockSpec((tm, N), lambda i: (i, 0)),
        compiler_params=pltpu.CompilerParams(
            dimension_semantics=("parallel",)),
        cost_estimate=cost,
    )(z, params["w1"], params["b1"], params["u2"], params["v2"],
      params["b2"], params["w3"], params["b3"])
    return out[:B]


# ----------------------------------------------------------------------------
# NeuralNetwork forward (flatten + fused sequential layers)
# ----------------------------------------------------------------------------
def init_params(key, in_features):
    """Deterministic parameter init mirroring the LayerFactory-built layers."""
    k1, k2, k3, k4, k5 = jax.random.split(key, 5)
    h1, rank, h2, out = 256, 32, 256, 128
    scale = 0.05
    params = {
        # layer 1: dense, relu (bf16 weights, fp32 bias)
        "w1": (scale * jax.random.normal(k1, (in_features, h1), jnp.float32)
               ).astype(jnp.bfloat16),
        "b1": jnp.zeros((1, h1), jnp.float32),
        # layer 2: lowrank (W = U @ V), relu
        "u2": (scale * jax.random.normal(k2, (h1, rank), jnp.float32)
               ).astype(jnp.bfloat16),
        "v2": (scale * jax.random.normal(k3, (rank, h2), jnp.float32)
               ).astype(jnp.bfloat16),
        "b2": jnp.zeros((1, h2), jnp.float32),
        # layer 3: dense, linear
        "w3": (scale * jax.random.normal(k4, (h2, out), jnp.float32)
               ).astype(jnp.bfloat16),
        "b3": scale * jax.random.normal(k5, (1, out), jnp.float32),
    }
    return params


@jax.jit
def neural_network_forward(x_nchw, params):
    # nn.Flatten(): [B, C, H, W] -> [B, C*H*W]
    B = x_nchw.shape[0]
    z = x_nchw.reshape(B, -1).astype(jnp.float32)
    return fused_mlp(z, params)


# TODO(synk): NeuralNetwork.step() (per-layer optimizer step) is training-only
# and has no forward-pass Pallas equivalent; not implemented.


def _reference_forward(x_nchw, params):
    """Pure-JAX reference mirroring the kernel's bf16-operand / fp32-acc math."""
    z = x_nchw.reshape(x_nchw.shape[0], -1).astype(jnp.float32)

    def mm(a, w):
        return jnp.dot(a.astype(jnp.bfloat16), w,
                       preferred_element_type=jnp.float32)

    h = jnp.maximum(mm(z, params["w1"]) + params["b1"], 0.0)
    t = mm(h, params["u2"])
    h2 = jnp.maximum(mm(t, params["v2"]) + params["b2"], 0.0)
    return mm(h2, params["w3"]) + params["b3"]


if __name__ == "__main__":
    key = jax.random.PRNGKey(0)
    kx, kp = jax.random.split(key)

    # Small NCHW input: batch=2, channels=4, spatial=16x16 -> flatten to 1024.
    x = jax.random.normal(kx, (2, 4, 16, 16), jnp.float32)
    params = init_params(kp, in_features=4 * 16 * 16)

    out = neural_network_forward(x, params)
    jax.block_until_ready(out)

    ref = _reference_forward(x, params)
    assert out.shape == (2, 128), out.shape
    assert jnp.allclose(out, ref, atol=1e-2, rtol=1e-2), (
        float(jnp.max(jnp.abs(out - ref))))

    print("KERNEL_OK")
</pallas_src>

<mosaic_0001>
module attributes {stable_mosaic.version = 11 : i64} {
  func.func @_fused_mlp_kernel(%arg0: i32, %arg1: memref<8x1024xf32, #tpu.memory_space<vmem>>, %arg2: memref<1024x256xbf16, #tpu.memory_space<vmem>>, %arg3: memref<1x256xf32, #tpu.memory_space<vmem>>, %arg4: memref<256x32xbf16, #tpu.memory_space<vmem>>, %arg5: memref<32x256xbf16, #tpu.memory_space<vmem>>, %arg6: memref<1x256xf32, #tpu.memory_space<vmem>>, %arg7: memref<256x128xbf16, #tpu.memory_space<vmem>>, %arg8: memref<1x128xf32, #tpu.memory_space<vmem>>, %arg9: memref<8x128xf32, #tpu.memory_space<vmem>>) attributes {dimension_semantics = [#tpu.dimension_semantics<parallel>], iteration_bounds = array<i64: 1>, scalar_prefetch = 0 : i64, scratch_operands = 0 : i64, tpu.core_type = #tpu.core_type<tc>, window_params = [{transform_indices = @transform_0, window_bounds = array<i64: 8, 1024>}, {pipeline_mode = #tpu.pipeline_mode<synchronous>, transform_indices = @transform_1, window_bounds = array<i64: 1024, 256>}, {pipeline_mode = #tpu.pipeline_mode<synchronous>, transform_indices = @transform_2, window_bounds = array<i64: 1, 256>}, {pipeline_mode = #tpu.pipeline_mode<synchronous>, transform_indices = @transform_3, window_bounds = array<i64: 256, 32>}, {pipeline_mode = #tpu.pipeline_mode<synchronous>, transform_indices = @transform_4, window_bounds = array<i64: 32, 256>}, {pipeline_mode = #tpu.pipeline_mode<synchronous>, transform_indices = @transform_5, window_bounds = array<i64: 1, 256>}, {pipeline_mode = #tpu.pipeline_mode<synchronous>, transform_indices = @transform_6, window_bounds = array<i64: 256, 128>}, {pipeline_mode = #tpu.pipeline_mode<synchronous>, transform_indices = @transform_7, window_bounds = array<i64: 1, 128>}, {transform_indices = @transform_8, window_bounds = array<i64: 8, 128>}]} {
    %c0 = arith.constant 0 : index
    %c0_0 = arith.constant 0 : index
    %0 = vector.load %arg1[%c0, %c0_0] : memref<8x1024xf32, #tpu.memory_space<vmem>>, vector<8x1024xf32>
    %1 = arith.truncf %0 : vector<8x1024xf32> to vector<8x1024xbf16>
    %c0_1 = arith.constant 0 : index
    %c0_2 = arith.constant 0 : index
    %2 = vector.load %arg2[%c0_1, %c0_2] : memref<1024x256xbf16, #tpu.memory_space<vmem>>, vector<1024x256xbf16>
    %cst = arith.constant dense<0.000000e+00> : vector<8x256xf32>
    %3 = tpu.matmul %1, %2, %cst {dimension_numbers = #tpu.dot_dimension_numbers<[1], [0], [0], [1], [0, 0, 1, 1], [], []>} : vector<8x1024xbf16>, vector<1024x256xbf16>, vector<8x256xf32> -> vector<8x256xf32>
    %c0_3 = arith.constant 0 : index
    %c0_4 = arith.constant 0 : index
    %4 = vector.load %arg3[%c0_3, %c0_4] : memref<1x256xf32, #tpu.memory_space<vmem>>, vector<1x256xf32>
    %5 = vector.broadcast %4 : vector<1x256xf32> to vector<8x256xf32>
    %6 = arith.addf %3, %5 : vector<8x256xf32>
    %cst_5 = arith.constant 0.000000e+00 : f32
    %7 = vector.broadcast %cst_5 : f32 to vector<8x256xf32>
    %8 = arith.maximumf %6, %7 : vector<8x256xf32>
    %9 = arith.truncf %8 : vector<8x256xf32> to vector<8x256xbf16>
    %c0_6 = arith.constant 0 : index
    %c0_7 = arith.constant 0 : index
    %10 = vector.load %arg4[%c0_6, %c0_7] : memref<256x32xbf16, #tpu.memory_space<vmem>>, vector<256x32xbf16>
    %cst_8 = arith.constant dense<0.000000e+00> : vector<8x32xf32>
    %11 = tpu.matmul %9, %10, %cst_8 {dimension_numbers = #tpu.dot_dimension_numbers<[1], [0], [0], [1], [0, 0, 1, 1], [], []>} : vector<8x256xbf16>, vector<256x32xbf16>, vector<8x32xf32> -> vector<8x32xf32>
    %12 = arith.truncf %11 : vector<8x32xf32> to vector<8x32xbf16>
    %c0_9 = arith.constant 0 : index
    %c0_10 = arith.constant 0 : index
    %13 = vector.load %arg5[%c0_9, %c0_10] : memref<32x256xbf16, #tpu.memory_space<vmem>>, vector<32x256xbf16>
    %cst_11 = arith.constant dense<0.000000e+00> : vector<8x256xf32>
    %14 = tpu.matmul %12, %13, %cst_11 {dimension_numbers = #tpu.dot_dimension_numbers<[1], [0], [0], [1], [0, 0, 1, 1], [], []>} : vector<8x32xbf16>, vector<32x256xbf16>, vector<8x256xf32> -> vector<8x256xf32>
    %c0_12 = arith.constant 0 : index
    %c0_13 = arith.constant 0 : index
    %15 = vector.load %arg6[%c0_12, %c0_13] : memref<1x256xf32, #tpu.memory_space<vmem>>, vector<1x256xf32>
    %16 = vector.broadcast %15 : vector<1x256xf32> to vector<8x256xf32>
    %17 = arith.addf %14, %16 : vector<8x256xf32>
    %cst_14 = arith.constant 0.000000e+00 : f32
    %18 = vector.broadcast %cst_14 : f32 to vector<8x256xf32>
    %19 = arith.maximumf %17, %18 : vector<8x256xf32>
    %20 = arith.truncf %19 : vector<8x256xf32> to vector<8x256xbf16>
    %c0_15 = arith.constant 0 : index
    %c0_16 = arith.constant 0 : index
    %21 = vector.load %arg7[%c0_15, %c0_16] : memref<256x128xbf16, #tpu.memory_space<vmem>>, vector<256x128xbf16>
    %cst_17 = arith.constant dense<0.000000e+00> : vector<8x128xf32>
    %22 = tpu.matmul %20, %21, %cst_17 {dimension_numbers = #tpu.dot_dimension_numbers<[1], [0], [0], [1], [0, 0, 1, 1], [], []>} : vector<8x256xbf16>, vector<256x128xbf16>, vector<8x128xf32> -> vector<8x128xf32>
    %c0_18 = arith.constant 0 : index
    %c0_19 = arith.constant 0 : index
    %23 = vector.load %arg8[%c0_18, %c0_19] : memref<1x128xf32, #tpu.memory_space<vmem>>, vector<1x128xf32>
    %24 = vector.broadcast %23 : vector<1x128xf32> to vector<8x128xf32>
    %25 = arith.addf %22, %24 : vector<8x128xf32>
    %c0_20 = arith.constant 0 : index
    %c0_21 = arith.constant 0 : index
    %26 = vector.load %arg9[%c0_20, %c0_21] : memref<8x128xf32, #tpu.memory_space<vmem>>, vector<8x128xf32>
    tpu.vector_store %arg9[%c0_20, %c0_21], %25 {strides = array<i32>} : memref<8x128xf32, #tpu.memory_space<vmem>>, vector<8x128xf32>,
    return
  }
  func.func @transform_0(%arg0: i32) -> (i32, i32) {
    %c0_i32 = arith.constant 0 : i32
    %c0_i32_0 = arith.constant 0 : i32
    return %arg0, %c0_i32 : i32, i32
  }
  func.func @transform_1(%arg0: i32) -> (i32, i32) {
    %c0_i32 = arith.constant 0 : i32
    %c0_i32_0 = arith.constant 0 : i32
    %c0_i32_1 = arith.constant 0 : i32
    return %c0_i32, %c0_i32_0 : i32, i32
  }
  func.func @transform_2(%arg0: i32) -> (i32, i32) {
    %c0_i32 = arith.constant 0 : i32
    %c0_i32_0 = arith.constant 0 : i32
    %c0_i32_1 = arith.constant 0 : i32
    return %c0_i32, %c0_i32_0 : i32, i32
  }
  func.func @transform_3(%arg0: i32) -> (i32, i32) {
    %c0_i32 = arith.constant 0 : i32
    %c0_i32_0 = arith.constant 0 : i32
    %c0_i32_1 = arith.constant 0 : i32
    return %c0_i32, %c0_i32_0 : i32, i32
  }
  func.func @transform_4(%arg0: i32) -> (i32, i32) {
    %c0_i32 = arith.constant 0 : i32
    %c0_i32_0 = arith.constant 0 : i32
    %c0_i32_1 = arith.constant 0 : i32
    return %c0_i32, %c0_i32_0 : i32, i32
  }
  func.func @transform_5(%arg0: i32) -> (i32, i32) {
    %c0_i32 = arith.constant 0 : i32
    %c0_i32_0 = arith.constant 0 : i32
    %c0_i32_1 = arith.constant 0 : i32
    return %c0_i32, %c0_i32_0 : i32, i32
  }
  func.func @transform_6(%arg0: i32) -> (i32, i32) {
    %c0_i32 = arith.constant 0 : i32
    %c0_i32_0 = arith.constant 0 : i32
    %c0_i32_1 = arith.constant 0 : i32
    return %c0_i32, %c0_i32_0 : i32, i32
  }
  func.func @transform_7(%arg0: i32) -> (i32, i32) {
    %c0_i32 = arith.constant 0 : i32
    %c0_i32_0 = arith.constant 0 : i32
    %c0_i32_1 = arith.constant 0 : i32
    return %c0_i32, %c0_i32_0 : i32, i32
  }
  func.func @transform_8(%arg0: i32) -> (i32, i32) {
    %c0_i32 = arith.constant 0 : i32
    %c0_i32_0 = arith.constant 0 : i32
    return %arg0, %c0_i32 : i32, i32
  }
}

</mosaic_0001>

<llo_original>
// kernel: neural_network_forward.1
$region0: #{neural_network_forward.1}
  #allocation0 [shape = 'u32[]', space=smem, size = 0x4, offset = 0x4, fixed_abs, tag = 'smem constant byte address 0x4 - core index']
  #allocation1 [shape = 'u32[144,128]{1,0:T(1,128)}', space=vmem, size = 0x12000, scoped, tag = 'internal scratch']
  %s0 = inlined_call_operand.vmem [shape: f32[8,1024], index: 0, kind: input, shape index: {}]
  %s1 = inlined_call_operand.hbm [shape: bf16[1024,256], index: 1, kind: input, shape index: {}]
  %s2 = inlined_call_operand.vmem [shape: f32[1,256], index: 2, kind: input, shape index: {}]
  %s3 = inlined_call_operand.vmem [shape: bf16[256,32], index: 3, kind: input, shape index: {}]
  %s4 = inlined_call_operand.vmem [shape: bf16[32,256], index: 4, kind: input, shape index: {}]
  %s5 = inlined_call_operand.vmem [shape: f32[1,256], index: 5, kind: input, shape index: {}]
  %s6 = inlined_call_operand.vmem [shape: bf16[256,128], index: 6, kind: input, shape index: {}]
  %s7 = inlined_call_operand.vmem [shape: f32[1,128], index: 7, kind: input, shape index: {}]
  %s8 = inlined_call_operand.vmem [shape: f32[8,128], index: 8, kind: output, shape index: {}]
  %s9 = sld [smem:[#allocation0]]
  $region46: #{neural_network_forward.1} parent=0
    _
  %s11 = ssub.s32 1, %s9
  %s12 = scalar_select 0, %s11, %s9
  $region1: #{neural_network_forward.1} parent=0
    #allocation2 [shape = 'u8[524288]{0}', space=vmem, size = 0x80000, scoped, tag = 'input window, operand 1, single buffered']
    #allocation3 [shape = 's32[1]{0}', space=sflag, size = 0x4, scoped, tag = 'scoped memory for neural_network_forward.1']
    %13 = vsyncpa [#allocation3], 0
    // Predicated region
    $region2: #{neural_network_forward.1} parent=1 // pred_check
      _
    $region3: #{neural_network_forward.1} parent=1 // pred_check_branch
      %15 = sbr.rel (0) target = $region5
    $region4: #{neural_network_forward.1} parent=1 // pred_region
      _
    $region5: #{neural_network_forward.1} parent=1 // pred_fallthru
      _
    // Predicated region
    $region6: #{neural_network_forward.1} parent=1 // pred_check
      _
    $region7: #{neural_network_forward.1} parent=1 // pred_check_branch
      %17 = sbr.rel (0) target = $region9
    $region8: #{neural_network_forward.1} parent=1 // pred_region
      %s19 = ssub.s32 16384, 16384
      %20 = vsyncadd [#allocation3], %s19
      %s21 = sshll.u32 [#allocation2], 4
      %s22 = int_to_ptr.vmem [resolvable:$true] %s21
      %27 = dma.hbm_to_vmem [thread:$0]  %s1, 16384, %s22, [#allocation3], 128, 128, 8
    $region9: #{neural_network_forward.1} parent=1 // pred_fallthru
      _
    // Predicated region
    $region10: #{neural_network_forward.1} parent=1 // pred_check
      _
    $region11: #{neural_network_forward.1} parent=1 // pred_check_branch
      %29 = sbr.rel (0) target = $region13
    $region12: #{neural_network_forward.1} parent=1 // pred_region
      _
    $region13: #{neural_network_forward.1} parent=1 // pred_fallthru
      _
    // Predicated region
    $region14: #{neural_network_forward.1} parent=1 // pred_check
      _
    $region15: #{neural_network_forward.1} parent=1 // pred_check_branch
      %31 = sbr.rel (0) target = $region17
    $region16: #{neural_network_forward.1} parent=1 // pred_region
      _
    $region17: #{neural_network_forward.1} parent=1 // pred_fallthru
      _
    // Predicated region
    $region18: #{neural_network_forward.1} parent=1 // pred_check
      _
    $region19: #{neural_network_forward.1} parent=1 // pred_check_branch
      %33 = sbr.rel (0) target = $region21
    $region20: #{neural_network_forward.1} parent=1 // pred_region
      _
    $region21: #{neural_network_forward.1} parent=1 // pred_fallthru
      _
    // Predicated region
    $region22: #{neural_network_forward.1} parent=1 // pred_check
      _
    $region23: #{neural_network_forward.1} parent=1 // pred_check_branch
      %35 = sbr.rel (0) target = $region25
    $region24: #{neural_network_forward.1} parent=1 // pred_region
      _
    $region25: #{neural_network_forward.1} parent=1 // pred_fallthru
      _
    // Predicated region
    $region26: #{neural_network_forward.1} parent=1 // pred_check
      _
    $region27: #{neural_network_forward.1} parent=1 // pred_check_branch
      %37 = sbr.rel (0) target = $region29
    $region28: #{neural_network_forward.1} parent=1 // pred_region
      _
    $region29: #{neural_network_forward.1} parent=1 // pred_fallthru
      _
    // Predicated region
    $region30: #{neural_network_forward.1} parent=1 // pred_check
      _
    $region31: #{neural_network_forward.1} parent=1 // pred_check_branch
      %39 = sbr.rel (0) target = $region33
    $region32: #{neural_network_forward.1} parent=1 // pred_region
      _
    $region33: #{neural_network_forward.1} parent=1 // pred_fallthru
      _
    // Predicated region
    $region34: #{neural_network_forward.1} parent=1 // pred_check
      _
    $region35: #{neural_network_forward.1} parent=1 // pred_check_branch
      %41 = sbr.rel (0) target = $region37
    $region36: #{neural_network_forward.1} parent=1 // pred_region
      %42 = dma.done [#allocation3], 16384
    $region37: #{neural_network_forward.1} parent=1 // pred_fallthru
      _
    %v44 = vld [vmem:[%s0] sm:$0xff]
    %v45 = vld [vmem:[%s0 + $0x8] sm:$0xff]
    %v46 = vld [vmem:[%s0 + $0x10] sm:$0xff]
    %v47 = vld [vmem:[%s0 + $0x18] sm:$0xff]
    %v48 = vld [vmem:[%s0 + $0x20] sm:$0xff]
    %v49 = vld [vmem:[%s0 + $0x28] sm:$0xff]
    %v50 = vld [vmem:[%s0 + $0x30] sm:$0xff]
    %v51 = vld [vmem:[%s0 + $0x38] sm:$0xff]
    %v52 = vpack.c.bf16 %v44, %v44
    %v53 = vpack.c.bf16 %v45, %v45
    %v54 = vpack.c.bf16 %v46, %v46
    %v55 = vpack.c.bf16 %v47, %v47
    %v56 = vpack.c.bf16 %v48, %v48
    %v57 = vpack.c.bf16 %v49, %v49
    %v58 = vpack.c.bf16 %v50, %v50
    %v59 = vpack.c.bf16 %v51, %v51
    %v60 = vld [vmem:[#allocation2] sm:$0xff]
    %v61 = vld [vmem:[#allocation2 + $0x8] sm:$0xff]
    %v62 = vld [vmem:[#allocation2 + $0x10] sm:$0xff]
    %v63 = vld [vmem:[#allocation2 + $0x18] sm:$0xff]
    %v64 = vld [vmem:[#allocation2 + $0x20] sm:$0xff]
    %v65 = vld [vmem:[#allocation2 + $0x28] sm:$0xff]
    %v66 = vld [vmem:[#allocation2 + $0x30] sm:$0xff]
    %v67 = vld [vmem:[#allocation2 + $0x38] sm:$0xff]
    %v68 = vld [vmem:[#allocation2 + $0x40] sm:$0xff]
    %v69 = vld [vmem:[#allocation2 + $0x48] sm:$0xff]
    %v70 = vld [vmem:[#allocation2 + $0x50] sm:$0xff]
    %v71 = vld [vmem:[#allocation2 + $0x58] sm:$0xff]
    %v72 = vld [vmem:[#allocation2 + $0x60] sm:$0xff]
    %v73 = vld [vmem:[#allocation2 + $0x68] sm:$0xff]
    %v74 = vld [vmem:[#allocation2 + $0x70] sm:$0xff]
    %v75 = vld [vmem:[#allocation2 + $0x78] sm:$0xff]
    %v76 = vld [vmem:[#allocation2 + $0x80] sm:$0xff]
    %v77 = vld [vmem:[#allocation2 + $0x88] sm:$0xff]
    %v78 = vld [vmem:[#allocation2 + $0x90] sm:$0xff]
    %v79 = vld [vmem:[#allocation2 + $0x98] sm:$0xff]
    %v80 = vld [vmem:[#allocation2 + $0xa0] sm:$0xff]
    %v81 = vld [vmem:[#allocation2 + $0xa8] sm:$0xff]
    %v82 = vld [vmem:[#allocation2 + $0xb0] sm:$0xff]
    %v83 = vld [vmem:[#allocation2 + $0xb8] sm:$0xff]
    %v84 = vld [vmem:[#allocation2 + $0xc0] sm:$0xff]
    %v85 = vld [vmem:[#allocation2 + $0xc8] sm:$0xff]
    %v86 = vld [vmem:[#allocation2 + $0xd0] sm:$0xff]
    %v87 = vld [vmem:[#allocation2 + $0xd8] sm:$0xff]
    %v88 = vld [vmem:[#allocation2 + $0xe0] sm:$0xff]
    %v89 = vld [vmem:[#allocation2 + $0xe8] sm:$0xff]
    %v90 = vld [vmem:[#allocation2 + $0xf0] sm:$0xff]
    %v91 = vld [vmem:[#allocation2 + $0xf8] sm:$0xff]
    %v92 = vld [vmem:[#allocation2 + $0x100] sm:$0xff]
    %v93 = vld [vmem:[#allocation2 + $0x108] sm:$0xff]
    %v94 = vld [vmem:[#allocation2 + $0x110] sm:$0xff]
    %v95 = vld [vmem:[#allocation2 + $0x118] sm:$0xff]
    %v96 = vld [vmem:[#allocation2 + $0x120] sm:$0xff]
    %v97 = vld [vmem:[#allocation2 + $0x128] sm:$0xff]
    %v98 = vld [vmem:[#allocation2 + $0x130] sm:$0xff]
    %v99 = vld [vmem:[#allocation2 + $0x138] sm:$0xff]
    %v100 = vld [vmem:[#allocation2 + $0x140] sm:$0xff]
    %v101 = vld [vmem:[#allocation2 + $0x148] sm:$0xff]
    %v102 = vld [vmem:[#allocation2 + $0x150] sm:$0xff]
    %v103 = vld [vmem:[#allocation2 + $0x158] sm:$0xff]
    %v104 = vld [vmem:[#allocation2 + $0x160] sm:$0xff]
    %v105 = vld [vmem:[#allocation2 + $0x168] sm:$0xff]
    %v106 = vld [vmem:[#allocation2 + $0x170] sm:$0xff]
    %v107 = vld [vmem:[#allocation2 + $0x178] sm:$0xff]
    %v108 = vld [vmem:[#allocation2 + $0x180] sm:$0xff]
    %v109 = vld [vmem:[#allocation2 + $0x188] sm:$0xff]
    %v110 = vld [vmem:[#allocation2 + $0x190] sm:$0xff]
    %v111 = vld [vmem:[#allocation2 + $0x198] sm:$0xff]
    %v112 = vld [vmem:[#allocation2 + $0x1a0] sm:$0xff]
    %v113 = vld [vmem:[#allocation2 + $0x1a8] sm:$0xff]
    %v114 = vld [vmem:[#allocation2 + $0x1b0] sm:$0xff]
    %v115 = vld [vmem:[#allocation2 + $0x1b8] sm:$0xff]
    %v116 = vld [vmem:[#allocation2 + $0x1c0] sm:$0xff]
    %v117 = vld [vmem:[#allocation2 + $0x1c8] sm:$0xff]
    %v118 = vld [vmem:[#allocation2 + $0x1d0] sm:$0xff]
    %v119 = vld [vmem:[#allocation2 + $0x1d8] sm:$0xff]
    %v120 = vld [vmem:[#allocation2 + $0x1e0] sm:$0xff]
    %v121 = vld [vmem:[#allocation2 + $0x1e8] sm:$0xff]
    %v122 = vld [vmem:[#allocation2 + $0x1f0] sm:$0xff]
    %v123 = vld [vmem:[#allocation2 + $0x1f8] sm:$0xff]
    %v124 = vld [vmem:[#allocation2 + $0x200] sm:$0xff]
    %v125 = vld [vmem:[#allocation2 + $0x208] sm:$0xff]
    %v126 = vld [vmem:[#allocation2 + $0x210] sm:$0xff]
    %v127 = vld [vmem:[#allocation2 + $0x218] sm:$0xff]
    %v128 = vld [vmem:[#allocation2 + $0x220] sm:$0xff]
    %v129 = vld [vmem:[#allocation2 + $0x228] sm:$0xff]
    %v130 = vld [vmem:[#allocation2 + $0x230] sm:$0xff]
    %v131 = vld [vmem:[#allocation2 + $0x238] sm:$0xff]
    %v132 = vld [vmem:[#allocation2 + $0x240] sm:$0xff]
    %v133 = vld [vmem:[#allocation2 + $0x248] sm:$0xff]
    %v134 = vld [vmem:[#allocation2 + $0x250] sm:$0xff]
    %v135 = vld [vmem:[#allocation2 + $0x258] sm:$0xff]
    %v136 = vld [vmem:[#allocation2 + $0x260] sm:$0xff]
    %v137 = vld [vmem:[#allocation2 + $0x268] sm:$0xff]
    %v138 = vld [vmem:[#allocation2 + $0x270] sm:$0xff]
    %v139 = vld [vmem:[#allocation2 + $0x278] sm:$0xff]
    %v140 = vld [vmem:[#allocation2 + $0x280] sm:$0xff]
    %v141 = vld [vmem:[#allocation2 + $0x288] sm:$0xff]
    %v142 = vld [vmem:[#allocation2 + $0x290] sm:$0xff]
    %v143 = vld [vmem:[#allocation2 + $0x298] sm:$0xff]
    %v144 = vld [vmem:[#allocation2 + $0x2a0] sm:$0xff]
    %v145 = vld [vmem:[#allocation2 + $0x2a8] sm:$0xff]
    %v146 = vld [vmem:[#allocation2 + $0x2b0] sm:$0xff]
    %v147 = vld [vmem:[#allocation2 + $0x2b8] sm:$0xff]
    %v148 = vld [vmem:[#allocation2 + $0x2c0] sm:$0xff]
    %v149 = vld [vmem:[#allocation2 + $0x2c8] sm:$0xff]
    %v150 = vld [vmem:[#allocation2 + $0x2d0] sm:$0xff]
    %v151 = vld [vmem:[#allocation2 + $0x2d8] sm:$0xff]
    %v152 = vld [vmem:[#allocation2 + $0x2e0] sm:$0xff]
    %v153 = vld [vmem:[#allocation2 + $0x2e8] sm:$0xff]
    %v154 = vld [vmem:[#allocation2 + $0x2f0] sm:$0xff]
    %v155 = vld [vmem:[#allocation2 + $0x2f8] sm:$0xff]
    %v156 = vld [vmem:[#allocation2 + $0x300] sm:$0xff]
    %v157 = vld [vmem:[#allocation2 + $0x308] sm:$0xff]
    %v158 = vld [vmem:[#allocation2 + $0x310] sm:$0xff]
    %v159 = vld [vmem:[#allocation2 + $0x318] sm:$0xff]
    %v160 = vld [vmem:[#allocation2 + $0x320] sm:$0xff]
    %v161 = vld [vmem:[#allocation2 + $0x328] sm:$0xff]
    %v162 = vld [vmem:[#allocation2 + $0x330] sm:$0xff]
    %v163 = vld [vmem:[#allocation2 + $0x338] sm:$0xff]
    %v164 = vld [vmem:[#allocation2 + $0x340] sm:$0xff]
    %v165 = vld [vmem:[#allocation2 + $0x348] sm:$0xff]
    %v166 = vld [vmem:[#allocation2 + $0x350] sm:$0xff]
    %v167 = vld [vmem:[#allocation2 + $0x358] sm:$0xff]
    %v168 = vld [vmem:[#allocation2 + $0x360] sm:$0xff]
    %v169 = vld [vmem:[#allocation2 + $0x368] sm:$0xff]
    %v170 = vld [vmem:[#allocation2 + $0x370] sm:$0xff]
    %v171 = vld [vmem:[#allocation2 + $0x378] sm:$0xff]
    %v172 = vld [vmem:[#allocation2 + $0x380] sm:$0xff]
    %v173 = vld [vmem:[#allocation2 + $0x388] sm:$0xff]
    %v174 = vld [vmem:[#allocation2 + $0x390] sm:$0xff]
    %v175 = vld [vmem:[#allocation2 + $0x398] sm:$0xff]
    %v176 = vld [vmem:[#allocation2 + $0x3a0] sm:$0xff]
    %v177 = vld [vmem:[#allocation2 + $0x3a8] sm:$0xff]
    %v178 = vld [vmem:[#allocation2 + $0x3b0] sm:$0xff]
    %v179 = vld [vmem:[#allocation2 + $0x3b8] sm:$0xff]
    %v180 = vld [vmem:[#allocation2 + $0x3c0] sm:$0xff]
    %v181 = vld [vmem:[#allocation2 + $0x3c8] sm:$0xff]
    %v182 = vld [vmem:[#allocation2 + $0x3d0] sm:$0xff]
    %v183 = vld [vmem:[#allocation2 + $0x3d8] sm:$0xff]
    %v184 = vld [vmem:[#allocation2 + $0x3e0] sm:$0xff]
    %v185 = vld [vmem:[#allocation2 + $0x3e8] sm:$0xff]
    %v186 = vld [vmem:[#allocation2 + $0x3f0] sm:$0xff]
    %v187 = vld [vmem:[#allocation2 + $0x3f8] sm:$0xff]
    %v188 = vld [vmem:[%s2] sm:$0x3]
    %v190 = vlaneseq
    %v191 = vshrl.u32 %v190, 7
    %v192 = vsub.s32 0, %v191
    %v193 = vrot.slane %v188, %v192
    %v194 = vlaneseq
    %v195 = vshrl.u32 %v194, 7
    %v196 = vsub.s32 1, %v195
    %v197 = vrot.slane %v188, %v196
    %v328 = vunpack.c.l.b16 %v60
    %v329 = vunpack.c.h.b16 %v60
    %v330 = vunpack.c.l.b16 %v61
    %v331 = vunpack.c.h.b16 %v61
    %v332 = vunpack.c.l.b16 %v62
    %v333 = vunpack.c.h.b16 %v62
    %v334 = vunpack.c.l.b16 %v63
    %v335 = vunpack.c.h.b16 %v63
    %v336 = vunpack.c.l.b16 %v64
    %v337 = vunpack.c.h.b16 %v64
    %v338 = vunpack.c.l.b16 %v65
    %v339 = vunpack.c.h.b16 %v65
    %v340 = vunpack.c.l.b16 %v66
    %v341 = vunpack.c.h.b16 %v66
    %v342 = vunpack.c.l.b16 %v67
    %v343 = vunpack.c.h.b16 %v67
    %v344 = vunpack.c.l.b16 %v68
    %v345 = vunpack.c.h.b16 %v68
    %v346 = vunpack.c.l.b16 %v69
    %v347 = vunpack.c.h.b16 %v69
    %v348 = vunpack.c.l.b16 %v70
    %v349 = vunpack.c.h.b16 %v70
    %v350 = vunpack.c.l.b16 %v71
    %v351 = vunpack.c.h.b16 %v71
    %v352 = vunpack.c.l.b16 %v72
    %v353 = vunpack.c.h.b16 %v72
    %v354 = vunpack.c.l.b16 %v73
    %v355 = vunpack.c.h.b16 %v73
    %v356 = vunpack.c.l.b16 %v74
    %v357 = vunpack.c.h.b16 %v74
    %v358 = vunpack.c.l.b16 %v75
    %v359 = vunpack.c.h.b16 %v75
    %v360 = vunpack.c.l.b16 %v76
    %v361 = vunpack.c.h.b16 %v76
    %v362 = vunpack.c.l.b16 %v77
    %v363 = vunpack.c.h.b16 %v77
    %v364 = vunpack.c.l.b16 %v78
    %v365 = vunpack.c.h.b16 %v78
    %v366 = vunpack.c.l.b16 %v79
    %v367 = vunpack.c.h.b16 %v79
    %v368 = vunpack.c.l.b16 %v80
    %v369 = vunpack.c.h.b16 %v80
    %v370 = vunpack.c.l.b16 %v81
    %v371 = vunpack.c.h.b16 %v81
    %v372 = vunpack.c.l.b16 %v82
    %v373 = vunpack.c.h.b16 %v82
    %v374 = vunpack.c.l.b16 %v83
    %v375 = vunpack.c.h.b16 %v83
    %v376 = vunpack.c.l.b16 %v84
    %v377 = vunpack.c.h.b16 %v84
    %v378 = vunpack.c.l.b16 %v85
    %v379 = vunpack.c.h.b16 %v85
    %v380 = vunpack.c.l.b16 %v86
    %v381 = vunpack.c.h.b16 %v86
    %v382 = vunpack.c.l.b16 %v87
    %v383 = vunpack.c.h.b16 %v87
    %v384 = vunpack.c.l.b16 %v88
    %v385 = vunpack.c.h.b16 %v88
    %v386 = vunpack.c.l.b16 %v89
    %v387 = vunpack.c.h.b16 %v89
    %v388 = vunpack.c.l.b16 %v90
    %v389 = vunpack.c.h.b16 %v90
    %v390 = vunpack.c.l.b16 %v91
    %v391 = vunpack.c.h.b16 %v91
    %v392 = vunpack.c.l.b16 %v92
    %v393 = vunpack.c.h.b16 %v92
    %v394 = vunpack.c.l.b16 %v93
    %v395 = vunpack.c.h.b16 %v93
    %v396 = vunpack.c.l.b16 %v94
    %v397 = vunpack.c.h.b16 %v94
    %v398 = vunpack.c.l.b16 %v95
    %v399 = vunpack.c.h.b16 %v95
    %v400 = vunpack.c.l.b16 %v96
    %v401 = vunpack.c.h.b16 %v96
    %v402 = vunpack.c.l.b16 %v97
    %v403 = vunpack.c.h.b16 %v97
    %v404 = vunpack.c.l.b16 %v98
    %v405 = vunpack.c.h.b16 %v98
    %v406 = vunpack.c.l.b16 %v99
    %v407 = vunpack.c.h.b16 %v99
    %v408 = vunpack.c.l.b16 %v100
    %v409 = vunpack.c.h.b16 %v100
    %v410 = vunpack.c.l.b16 %v101
    %v411 = vunpack.c.h.b16 %v101
    %v412 = vunpack.c.l.b16 %v102
    %v413 = vunpack.c.h.b16 %v102
    %v414 = vunpack.c.l.b16 %v103
    %v415 = vunpack.c.h.b16 %v103
    %v416 = vunpack.c.l.b16 %v104
    %v417 = vunpack.c.h.b16 %v104
    %v418 = vunpack.c.l.b16 %v105
    %v419 = vunpack.c.h.b16 %v105
    %v420 = vunpack.c.l.b16 %v106
    %v421 = vunpack.c.h.b16 %v106
    %v422 = vunpack.c.l.b16 %v107
    %v423 = vunpack.c.h.b16 %v107
    %v424 = vunpack.c.l.b16 %v108
    %v425 = vunpack.c.h.b16 %v108
    %v426 = vunpack.c.l.b16 %v109
    %v427 = vunpack.c.h.b16 %v109
    %v428 = vunpack.c.l.b16 %v110
    %v429 = vunpack.c.h.b16 %v110
    %v430 = vunpack.c.l.b16 %v111
    %v431 = vunpack.c.h.b16 %v111
    %v432 = vunpack.c.l.b16 %v112
    %v433 = vunpack.c.h.b16 %v112
    %v434 = vunpack.c.l.b16 %v113
    %v435 = vunpack.c.h.b16 %v113
    %v436 = vunpack.c.l.b16 %v114
    %v437 = vunpack.c.h.b16 %v114
    %v438 = vunpack.c.l.b16 %v115
    %v439 = vunpack.c.h.b16 %v115
    %v440 = vunpack.c.l.b16 %v116
    %v441 = vunpack.c.h.b16 %v116
    %v442 = vunpack.c.l.b16 %v117
    %v443 = vunpack.c.h.b16 %v117
    %v444 = vunpack.c.l.b16 %v118
    %v445 = vunpack.c.h.b16 %v118
    %v446 = vunpack.c.l.b16 %v119
    %v447 = vunpack.c.h.b16 %v119
    %v448 = vunpack.c.l.b16 %v120
    %v449 = vunpack.c.h.b16 %v120
    %v450 = vunpack.c.l.b16 %v121
    %v451 = vunpack.c.h.b16 %v121
    %v452 = vunpack.c.l.b16 %v122
    %v453 = vunpack.c.h.b16 %v122
    %v454 = vunpack.c.l.b16 %v123
    %v455 = vunpack.c.h.b16 %v123
    %v456 = vunpack.c.l.b16 %v124
    %v457 = vunpack.c.h.b16 %v124
    %v458 = vunpack.c.l.b16 %v125
    %v459 = vunpack.c.h.b16 %v125
    %v460 = vunpack.c.l.b16 %v126
    %v461 = vunpack.c.h.b16 %v126
    %v462 = vunpack.c.l.b16 %v127
    %v463 = vunpack.c.h.b16 %v127
    %v464 = vunpack.c.l.b16 %v128
    %v465 = vunpack.c.h.b16 %v128
    %v466 = vunpack.c.l.b16 %v129
    %v467 = vunpack.c.h.b16 %v129
    %v468 = vunpack.c.l.b16 %v130
    %v469 = vunpack.c.h.b16 %v130
    %v470 = vunpack.c.l.b16 %v131
    %v471 = vunpack.c.h.b16 %v131
    %v472 = vunpack.c.l.b16 %v132
    %v473 = vunpack.c.h.b16 %v132
    %v474 = vunpack.c.l.b16 %v133
    %v475 = vunpack.c.h.b16 %v133
    %v476 = vunpack.c.l.b16 %v134
    %v477 = vunpack.c.h.b16 %v134
    %v478 = vunpack.c.l.b16 %v135
    %v479 = vunpack.c.h.b16 %v135
    %v480 = vunpack.c.l.b16 %v136
    %v481 = vunpack.c.h.b16 %v136
    %v482 = vunpack.c.l.b16 %v137
    %v483 = vunpack.c.h.b16 %v137
    %v484 = vunpack.c.l.b16 %v138
    %v485 = vunpack.c.h.b16 %v138
    %v486 = vunpack.c.l.b16 %v139
    %v487 = vunpack.c.h.b16 %v139
    %v488 = vunpack.c.l.b16 %v140
    %v489 = vunpack.c.h.b16 %v140
    %v490 = vunpack.c.l.b16 %v141
    %v491 = vunpack.c.h.b16 %v141
    %v492 = vunpack.c.l.b16 %v142
    %v493 = vunpack.c.h.b16 %v142
    %v494 = vunpack.c.l.b16 %v143
    %v495 = vunpack.c.h.b16 %v143
    %v496 = vunpack.c.l.b16 %v144
    %v497 = vunpack.c.h.b16 %v144
    %v498 = vunpack.c.l.b16 %v145
    %v499 = vunpack.c.h.b16 %v145
    %v500 = vunpack.c.l.b16 %v146
    %v501 = vunpack.c.h.b16 %v146
    %v502 = vunpack.c.l.b16 %v147
    %v503 = vunpack.c.h.b16 %v147
    %v504 = vunpack.c.l.b16 %v148
    %v505 = vunpack.c.h.b16 %v148
    %v506 = vunpack.c.l.b16 %v149
    %v507 = vunpack.c.h.b16 %v149
    %v508 = vunpack.c.l.b16 %v150
    %v509 = vunpack.c.h.b16 %v150
    %v510 = vunpack.c.l.b16 %v151
    %v511 = vunpack.c.h.b16 %v151
    %v512 = vunpack.c.l.b16 %v152
    %v513 = vunpack.c.h.b16 %v152
    %v514 = vunpack.c.l.b16 %v153
    %v515 = vunpack.c.h.b16 %v153
    %v516 = vunpack.c.l.b16 %v154
    %v517 = vunpack.c.h.b16 %v154
    %v518 = vunpack.c.l.b16 %v155
    %v519 = vunpack.c.h.b16 %v155
    %v520 = vunpack.c.l.b16 %v156
    %v521 = vunpack.c.h.b16 %v156
    %v522 = vunpack.c.l.b16 %v157
    %v523 = vunpack.c.h.b16 %v157
    %v524 = vunpack.c.l.b16 %v158
    %v525 = vunpack.c.h.b16 %v158
    %v526 = vunpack.c.l.b16 %v159
    %v527 = vunpack.c.h.b16 %v159
    %v528 = vunpack.c.l.b16 %v160
    %v529 = vunpack.c.h.b16 %v160
    %v530 = vunpack.c.l.b16 %v161
    %v531 = vunpack.c.h.b16 %v161
    %v532 = vunpack.c.l.b16 %v162
    %v533 = vunpack.c.h.b16 %v162
    %v534 = vunpack.c.l.b16 %v163
    %v535 = vunpack.c.h.b16 %v163
    %v536 = vunpack.c.l.b16 %v164
    %v537 = vunpack.c.h.b16 %v164
    %v538 = vunpack.c.l.b16 %v165
    %v539 = vunpack.c.h.b16 %v165
    %v540 = vunpack.c.l.b16 %v166
    %v541 = vunpack.c.h.b16 %v166
    %v542 = vunpack.c.l.b16 %v167
    %v543 = vunpack.c.h.b16 %v167
    %v544 = vunpack.c.l.b16 %v168
    %v545 = vunpack.c.h.b16 %v168
    %v546 = vunpack.c.l.b16 %v169
    %v547 = vunpack.c.h.b16 %v169
    %v548 = vunpack.c.l.b16 %v170
    %v549 = vunpack.c.h.b16 %v170
    %v550 = vunpack.c.l.b16 %v171
    %v551 = vunpack.c.h.b16 %v171
    %v552 = vunpack.c.l.b16 %v172
    %v553 = vunpack.c.h.b16 %v172
    %v554 = vunpack.c.l.b16 %v173
    %v555 = vunpack.c.h.b16 %v173
    %v556 = vunpack.c.l.b16 %v174
    %v557 = vunpack.c.h.b16 %v174
    %v558 = vunpack.c.l.b16 %v175
    %v559 = vunpack.c.h.b16 %v175
    %v560 = vunpack.c.l.b16 %v176
    %v561 = vunpack.c.h.b16 %v176
    %v562 = vunpack.c.l.b16 %v177
    %v563 = vunpack.c.h.b16 %v177
    %v564 = vunpack.c.l.b16 %v178
    %v565 = vunpack.c.h.b16 %v178
    %v566 = vunpack.c.l.b16 %v179
    %v567 = vunpack.c.h.b16 %v179
    %v568 = vunpack.c.l.b16 %v180
    %v569 = vunpack.c.h.b16 %v180
    %v570 = vunpack.c.l.b16 %v181
    %v571 = vunpack.c.h.b16 %v181
    %v572 = vunpack.c.l.b16 %v182
    %v573 = vunpack.c.h.b16 %v182
    %v574 = vunpack.c.l.b16 %v183
    %v575 = vunpack.c.h.b16 %v183
    %v576 = vunpack.c.l.b16 %v184
    %v577 = vunpack.c.h.b16 %v184
    %v578 = vunpack.c.l.b16 %v185
    %v579 = vunpack.c.h.b16 %v185
    %v580 = vunpack.c.l.b16 %v186
    %v581 = vunpack.c.h.b16 %v186
    %v582 = vunpack.c.l.b16 %v187
    %v583 = vunpack.c.h.b16 %v187
    %v584 = vpack.c.b16 %v330, %v328
    %v585 = vpack.c.b16 %v331, %v329
    %v586 = vpack.c.b16 %v334, %v332
    %v587 = vpack.c.b16 %v335, %v333
    %v588 = vpack.c.b16 %v338, %v336
    %v589 = vpack.c.b16 %v339, %v337
    %v590 = vpack.c.b16 %v342, %v340
    %v591 = vpack.c.b16 %v343, %v341
    %v592 = vpack.c.b16 %v346, %v344
    %v593 = vpack.c.b16 %v347, %v345
    %v594 = vpack.c.b16 %v350, %v348
    %v595 = vpack.c.b16 %v351, %v349
    %v596 = vpack.c.b16 %v354, %v352
    %v597 = vpack.c.b16 %v355, %v353
    %v598 = vpack.c.b16 %v358, %v356
    %v599 = vpack.c.b16 %v359, %v357
    %v600 = vpack.c.b16 %v362, %v360
    %v601 = vpack.c.b16 %v363, %v361
    %v602 = vpack.c.b16 %v366, %v364
    %v603 = vpack.c.b16 %v367, %v365
    %v604 = vpack.c.b16 %v370, %v368
    %v605 = vpack.c.b16 %v371, %v369
    %v606 = vpack.c.b16 %v374, %v372
    %v607 = vpack.c.b16 %v375, %v373
    %v608 = vpack.c.b16 %v378, %v376
    %v609 = vpack.c.b16 %v379, %v377
    %v610 = vpack.c.b16 %v382, %v380
    %v611 = vpack.c.b16 %v383, %v381
    %v612 = vpack.c.b16 %v386, %v384
    %v613 = vpack.c.b16 %v387, %v385
    %v614 = vpack.c.b16 %v390, %v388
    %v615 = vpack.c.b16 %v391, %v389
    %v616 = vpack.c.b16 %v394, %v392
    %v617 = vpack.c.b16 %v395, %v393
    %v618 = vpack.c.b16 %v398, %v396
    %v619 = vpack.c.b16 %v399, %v397
    %v620 = vpack.c.b16 %v402, %v400
    %v621 = vpack.c.b16 %v403, %v401
    %v622 = vpack.c.b16 %v406, %v404
    %v623 = vpack.c.b16 %v407, %v405
    %v624 = vpack.c.b16 %v410, %v408
    %v625 = vpack.c.b16 %v411, %v409
    %v626 = vpack.c.b16 %v414, %v412
    %v627 = vpack.c.b16 %v415, %v413
    %v628 = vpack.c.b16 %v418, %v416
    %v629 = vpack.c.b16 %v419, %v417
    %v630 = vpack.c.b16 %v422, %v420
    %v631 = vpack.c.b16 %v423, %v421
    %v632 = vpack.c.b16 %v426, %v424
    %v633 = vpack.c.b16 %v427, %v425
    %v634 = vpack.c.b16 %v430, %v428
    %v635 = vpack.c.b16 %v431, %v429
    %v636 = vpack.c.b16 %v434, %v432
    %v637 = vpack.c.b16 %v435, %v433
    %v638 = vpack.c.b16 %v438, %v436
    %v639 = vpack.c.b16 %v439, %v437
    %v640 = vpack.c.b16 %v442, %v440
    %v641 = vpack.c.b16 %v443, %v441
    %v642 = vpack.c.b16 %v446, %v444
    %v643 = vpack.c.b16 %v447, %v445
    %v644 = vpack.c.b16 %v450, %v448
    %v645 = vpack.c.b16 %v451, %v449
    %v646 = vpack.c.b16 %v454, %v452
    %v647 = vpack.c.b16 %v455, %v453
    %v648 = vpack.c.b16 %v458, %v456
    %v649 = vpack.c.b16 %v459, %v457
    %v650 = vpack.c.b16 %v462, %v460
    %v651 = vpack.c.b16 %v463, %v461
    %v652 = vpack.c.b16 %v466, %v464
    %v653 = vpack.c.b16 %v467, %v465
    %v654 = vpack.c.b16 %v470, %v468
    %v655 = vpack.c.b16 %v471, %v469
    %v656 = vpack.c.b16 %v474, %v472
    %v657 = vpack.c.b16 %v475, %v473
    %v658 = vpack.c.b16 %v478, %v476
    %v659 = vpack.c.b16 %v479, %v477
    %v660 = vpack.c.b16 %v482, %v480
    %v661 = vpack.c.b16 %v483, %v481
    %v662 = vpack.c.b16 %v486, %v484
    %v663 = vpack.c.b16 %v487, %v485
    %v664 = vpack.c.b16 %v490, %v488
    %v665 = vpack.c.b16 %v491, %v489
    %v666 = vpack.c.b16 %v494, %v492
    %v667 = vpack.c.b16 %v495, %v493
    %v668 = vpack.c.b16 %v498, %v496
    %v669 = vpack.c.b16 %v499, %v497
    %v670 = vpack.c.b16 %v502, %v500
    %v671 = vpack.c.b16 %v503, %v501
    %v672 = vpack.c.b16 %v506, %v504
    %v673 = vpack.c.b16 %v507, %v505
    %v674 = vpack.c.b16 %v510, %v508
    %v675 = vpack.c.b16 %v511, %v509
    %v676 = vpack.c.b16 %v514, %v512
    %v677 = vpack.c.b16 %v515, %v513
    %v678 = vpack.c.b16 %v518, %v516
    %v679 = vpack.c.b16 %v519, %v517
    %v680 = vpack.c.b16 %v522, %v520
    %v681 = vpack.c.b16 %v523, %v521
    %v682 = vpack.c.b16 %v526, %v524
    %v683 = vpack.c.b16 %v527, %v525
    %v684 = vpack.c.b16 %v530, %v528
    %v685 = vpack.c.b16 %v531, %v529
    %v686 = vpack.c.b16 %v534, %v532
    %v687 = vpack.c.b16 %v535, %v533
    %v688 = vpack.c.b16 %v538, %v536
    %v689 = vpack.c.b16 %v539, %v537
    %v690 = vpack.c.b16 %v542, %v540
    %v691 = vpack.c.b16 %v543, %v541
    %v692 = vpack.c.b16 %v546, %v544
    %v693 = vpack.c.b16 %v547, %v545
    %v694 = vpack.c.b16 %v550, %v548
    %v695 = vpack.c.b16 %v551, %v549
    %v696 = vpack.c.b16 %v554, %v552
    %v697 = vpack.c.b16 %v555, %v553
    %v698 = vpack.c.b16 %v558, %v556
    %v699 = vpack.c.b16 %v559, %v557
    %v700 = vpack.c.b16 %v562, %v560
    %v701 = vpack.c.b16 %v563, %v561
    %v702 = vpack.c.b16 %v566, %v564
    %v703 = vpack.c.b16 %v567, %v565
    %v704 = vpack.c.b16 %v570, %v568
    %v705 = vpack.c.b16 %v571, %v569
    %v706 = vpack.c.b16 %v574, %v572
    %v707 = vpack.c.b16 %v575, %v573
    %v708 = vpack.c.b16 %v578, %v576
    %v709 = vpack.c.b16 %v579, %v577
    %v710 = vpack.c.b16 %v582, %v580
    %v711 = vpack.c.b16 %v583, %v581
    %840 = vmatprep.subr.bf16.mxu0 %v585
    %841 = vmatpush1.bf16.msra.mxu0 %v584
    %842 = vmatprep.subr.bf16.mxu0 %v587
    %843 = vmatpush1.bf16.msra.mxu0 %v586
    %844 = vmatprep.subr.bf16.mxu0 %v589
    %845 = vmatpush1.bf16.msra.mxu0 %v588
    %846 = vmatprep.subr.bf16.mxu0 %v591
    %847 = vmatpush1.bf16.msra.mxu0 %v590
    %848 = vmatprep.subr.bf16.mxu0 %v593
    %849 = vmatpush1.bf16.msra.mxu0 %v592
    %850 = vmatprep.subr.bf16.mxu0 %v595
    %851 = vmatpush1.bf16.msra.mxu0 %v594
    %852 = vmatprep.subr.bf16.mxu0 %v597
    %853 = vmatpush1.bf16.msra.mxu0 %v596
    %854 = vmatprep.subr.bf16.mxu0 %v599
    %855 = vmatpush1.bf16.msra.mxu0 %v598
    %856 = vmatprep.subr.bf16.mxu0 %v601
    %857 = vmatpush1.bf16.msra.mxu0 %v600
    %858 = vmatprep.subr.bf16.mxu0 %v603
    %859 = vmatpush1.bf16.msra.mxu0 %v602
    %860 = vmatprep.subr.bf16.mxu0 %v605
    %861 = vmatpush1.bf16.msra.mxu0 %v604
    %862 = vmatprep.subr.bf16.mxu0 %v607
    %863 = vmatpush1.bf16.msra.mxu0 %v606
    %864 = vmatprep.subr.bf16.mxu0 %v609
    %865 = vmatpush1.bf16.msra.mxu0 %v608
    %866 = vmatprep.subr.bf16.mxu0 %v611
    %867 = vmatpush1.bf16.msra.mxu0 %v610
    %868 = vmatprep.subr.bf16.mxu0 %v613
    %869 = vmatpush1.bf16.msra.mxu0 %v612
    %870 = vmatprep.subr.bf16.mxu0 %v615
    %871 = vmatpush1.bf16.msra.mxu0 %v614
    %872 = vmatprep.mubr.bf16.mxu0 %v53
    %873 = vmatmul.mubr.bf16.gmra.mrb[0].mxu0 %v52
    %v874 = vpop.f32.mrb[0].mxu0
    %v875 = vadd.f32 %v193, %v874
    %v876 = vpop.f32.mrb[0].mxu0
    %v877 = vadd.f32 %v197, %v876
    %v878 = vpop.f32.mrb[0].mxu0
    %v879 = vpop.f32.mrb[0].mxu0
    %880 = vdwg.mxu0
    %881 = vmatprep.subr.bf16.mxu0 %v617
    %882 = vmatpush1.bf16.msra.mxu0 %v616
    %883 = vmatprep.subr.bf16.mxu0 %v619
    %884 = vmatpush1.bf16.msra.mxu0 %v618
    %885 = vmatprep.subr.bf16.mxu0 %v621
    %886 = vmatpush1.bf16.msra.mxu0 %v620
    %887 = vmatprep.subr.bf16.mxu0 %v623
    %888 = vmatpush1.bf16.msra.mxu0 %v622
    %889 = vmatprep.subr.bf16.mxu0 %v625
    %890 = vmatpush1.bf16.msra.mxu0 %v624
    %891 = vmatprep.subr.bf16.mxu0 %v627
    %892 = vmatpush1.bf16.msra.mxu0 %v626
    %893 = vmatprep.subr.bf16.mxu0 %v629
    %894 = vmatpush1.bf16.msra.mxu0 %v628
    %895 = vmatprep.subr.bf16.mxu0 %v631
    %896 = vmatpush1.bf16.msra.mxu0 %v630
    %897 = vmatprep.subr.bf16.mxu0 %v633
    %898 = vmatpush1.bf16.msra.mxu0 %v632
    %899 = vmatprep.subr.bf16.mxu0 %v635
    %900 = vmatpush1.bf16.msra.mxu0 %v634
    %901 = vmatprep.subr.bf16.mxu0 %v637
    %902 = vmatpush1.bf16.msra.mxu0 %v636
    %903 = vmatprep.subr.bf16.mxu0 %v639
    %904 = vmatpush1.bf16.msra.mxu0 %v638
    %905 = vmatprep.subr.bf16.mxu0 %v641
    %906 = vmatpush1.bf16.msra.mxu0 %v640
    %907 = vmatprep.subr.bf16.mxu0 %v643
    %908 = vmatpush1.bf16.msra.mxu0 %v642
    %909 = vmatprep.subr.bf16.mxu0 %v645
    %910 = vmatpush1.bf16.msra.mxu0 %v644
    %911 = vmatprep.subr.bf16.mxu0 %v647
    %912 = vmatpush1.bf16.msra.mxu0 %v646
    %913 = vmatprep.mubr.bf16.mxu0 %v55
    %914 = vmatmul.mubr.bf16.gmra.mrb[0].mxu0 %v54
    %v915 = vpop.f32.mrb[0].mxu0
    %v916 = vadd.f32 %v875, %v915
    %v917 = vpop.f32.mrb[0].mxu0
    %v918 = vadd.f32 %v877, %v917
    %v919 = vpop.f32.mrb[0].mxu0
    %v920 = vpop.f32.mrb[0].mxu0
    %921 = vdwg.mxu0
    %922 = vmatprep.subr.bf16.mxu0 %v649
    %923 = vmatpush1.bf16.msra.mxu0 %v648
    %924 = vmatprep.subr.bf16.mxu0 %v651
    %925 = vmatpush1.bf16.msra.mxu0 %v650
    %926 = vmatprep.subr.bf16.mxu0 %v653
    %927 = vmatpush1.bf16.msra.mxu0 %v652
    %928 = vmatprep.subr.bf16.mxu0 %v655
    %929 = vmatpush1.bf16.msra.mxu0 %v654
    %930 = vmatprep.subr.bf16.mxu0 %v657
    %931 = vmatpush1.bf16.msra.mxu0 %v656
    %932 = vmatprep.subr.bf16.mxu0 %v659
    %933 = vmatpush1.bf16.msra.mxu0 %v658
    %934 = vmatprep.subr.bf16.mxu0 %v661
    %935 = vmatpush1.bf16.msra.mxu0 %v660
    %936 = vmatprep.subr.bf16.mxu0 %v663
    %937 = vmatpush1.bf16.msra.mxu0 %v662
    %938 = vmatprep.subr.bf16.mxu0 %v665
    %939 = vmatpush1.bf16.msra.mxu0 %v664
    %940 = vmatprep.subr.bf16.mxu0 %v667
    %941 = vmatpush1.bf16.msra.mxu0 %v666
    %942 = vmatprep.subr.bf16.mxu0 %v669
    %943 = vmatpush1.bf16.msra.mxu0 %v668
    %944 = vmatprep.subr.bf16.mxu0 %v671
    %945 = vmatpush1.bf16.msra.mxu0 %v670
    %946 = vmatprep.subr.bf16.mxu0 %v673
    %947 = vmatpush1.bf16.msra.mxu0 %v672
    %948 = vmatprep.subr.bf16.mxu0 %v675
    %949 = vmatpush1.bf16.msra.mxu0 %v674
    %950 = vmatprep.subr.bf16.mxu0 %v677
    %951 = vmatpush1.bf16.msra.mxu0 %v676
    %952 = vmatprep.subr.bf16.mxu0 %v679
    %953 = vmatpush1.bf16.msra.mxu0 %v678
    %954 = vmatprep.mubr.bf16.mxu0 %v57
    %955 = vmatmul.mubr.bf16.gmra.mrb[0].mxu0 %v56
    %v956 = vpop.f32.mrb[0].mxu0
    %v957 = vadd.f32 %v916, %v956
    %v958 = vpop.f32.mrb[0].mxu0
    %v959 = vadd.f32 %v918, %v958
    %v960 = vpop.f32.mrb[0].mxu0
    %v961 = vpop.f32.mrb[0].mxu0
    %962 = vdwg.mxu0
    %963 = vmatprep.subr.bf16.mxu0 %v681
    %964 = vmatpush1.bf16.msra.mxu0 %v680
    %965 = vmatprep.subr.bf16.mxu0 %v683
    %966 = vmatpush1.bf16.msra.mxu0 %v682
    %967 = vmatprep.subr.bf16.mxu0 %v685
    %968 = vmatpush1.bf16.msra.mxu0 %v684
    %969 = vmatprep.subr.bf16.mxu0 %v687
    %970 = vmatpush1.bf16.msra.mxu0 %v686
    %971 = vmatprep.subr.bf16.mxu0 %v689
    %972 = vmatpush1.bf16.msra.mxu0 %v688
    %973 = vmatprep.subr.bf16.mxu0 %v691
    %974 = vmatpush1.bf16.msra.mxu0 %v690
    %975 = vmatprep.subr.bf16.mxu0 %v693
    %976 = vmatpush1.bf16.msra.mxu0 %v692
    %977 = vmatprep.subr.bf16.mxu0 %v695
    %978 = vmatpush1.bf16.msra.mxu0 %v694
    %979 = vmatprep.subr.bf16.mxu0 %v697
    %980 = vmatpush1.bf16.msra.mxu0 %v696
    %981 = vmatprep.subr.bf16.mxu0 %v699
    %982 = vmatpush1.bf16.msra.mxu0 %v698
    %983 = vmatprep.subr.bf16.mxu0 %v701
    %984 = vmatpush1.bf16.msra.mxu0 %v700
    %985 = vmatprep.subr.bf16.mxu0 %v703
    %986 = vmatpush1.bf16.msra.mxu0 %v702
    %987 = vmatprep.subr.bf16.mxu0 %v705
    %988 = vmatpush1.bf16.msra.mxu0 %v704
    %989 = vmatprep.subr.bf16.mxu0 %v707
    %990 = vmatpush1.bf16.msra.mxu0 %v706
    %991 = vmatprep.subr.bf16.mxu0 %v709
    %992 = vmatpush1.bf16.msra.mxu0 %v708
    %993 = vmatprep.subr.bf16.mxu0 %v711
    %994 = vmatpush1.bf16.msra.mxu0 %v710
    %995 = vmatprep.mubr.bf16.mxu0 %v59
    %996 = vmatmul.mubr.bf16.gmra.mrb[0].mxu0 %v58
    %v997 = vpop.f32.mrb[0].mxu0
    %v998 = vadd.f32 %v957, %v997
    %v999 = vpop.f32.mrb[0].mxu0
    %v1000 = vadd.f32 %v959, %v999
    %v1001 = vpop.f32.mrb[0].mxu0
    %v1002 = vpop.f32.mrb[0].mxu0
    %1003 = vdwg.mxu0
    %v1004 = vmax.f32 %v998, 0.0
    %v1005 = vmax.f32 %v1000, 0.0
    %v1006 = vpack.c.bf16 %v1004, %v1004
    %v1007 = vpack.c.bf16 %v1005, %v1005
    %v1008 = vld [vmem:[%s3] sm:$0xf]
    %v1009 = vld [vmem:[%s3 + $0x4] sm:$0xf]
    %v1010 = vld [vmem:[%s3 + $0x8] sm:$0xf]
    %v1011 = vld [vmem:[%s3 + $0xc] sm:$0xf]
    %v1012 = vld [vmem:[%s3 + $0x10] sm:$0xf]
    %v1013 = vld [vmem:[%s3 + $0x14] sm:$0xf]
    %v1014 = vld [vmem:[%s3 + $0x18] sm:$0xf]
    %v1015 = vld [vmem:[%s3 + $0x1c] sm:$0xf]
    %v1016 = vld [vmem:[%s3 + $0x20] sm:$0xf]
    %v1017 = vld [vmem:[%s3 + $0x24] sm:$0xf]
    %v1018 = vld [vmem:[%s3 + $0x28] sm:$0xf]
    %v1019 = vld [vmem:[%s3 + $0x2c] sm:$0xf]
    %v1020 = vld [vmem:[%s3 + $0x30] sm:$0xf]
    %v1021 = vld [vmem:[%s3 + $0x34] sm:$0xf]
    %v1022 = vld [vmem:[%s3 + $0x38] sm:$0xf]
    %v1023 = vld [vmem:[%s3 + $0x3c] sm:$0xf]
    %v1024 = vld [vmem:[%s3 + $0x40] sm:$0xf]
    %v1025 = vld [vmem:[%s3 + $0x44] sm:$0xf]
    %v1026 = vld [vmem:[%s3 + $0x48] sm:$0xf]
    %v1027 = vld [vmem:[%s3 + $0x4c] sm:$0xf]
    %v1028 = vld [vmem:[%s3 + $0x50] sm:$0xf]
    %v1029 = vld [vmem:[%s3 + $0x54] sm:$0xf]
    %v1030 = vld [vmem:[%s3 + $0x58] sm:$0xf]
    %v1031 = vld [vmem:[%s3 + $0x5c] sm:$0xf]
    %v1032 = vld [vmem:[%s3 + $0x60] sm:$0xf]
    %v1033 = vld [vmem:[%s3 + $0x64] sm:$0xf]
    %v1034 = vld [vmem:[%s3 + $0x68] sm:$0xf]
    %v1035 = vld [vmem:[%s3 + $0x6c] sm:$0xf]
    %v1036 = vld [vmem:[%s3 + $0x70] sm:$0xf]
    %v1037 = vld [vmem:[%s3 + $0x74] sm:$0xf]
    %v1038 = vld [vmem:[%s3 + $0x78] sm:$0xf]
    %v1039 = vld [vmem:[%s3 + $0x7c] sm:$0xf]
    %v1072 = vunpack.c.l.b16 %v1008
    %v1073 = vunpack.c.l.b16 %v1009
    %v1074 = vunpack.c.l.b16 %v1010
    %v1075 = vunpack.c.l.b16 %v1011
    %v1076 = vunpack.c.l.b16 %v1012
    %v1077 = vunpack.c.l.b16 %v1013
    %v1078 = vunpack.c.l.b16 %v1014
    %v1079 = vunpack.c.l.b16 %v1015
    %v1080 = vunpack.c.l.b16 %v1016
    %v1081 = vunpack.c.l.b16 %v1017
    %v1082 = vunpack.c.l.b16 %v1018
    %v1083 = vunpack.c.l.b16 %v1019
    %v1084 = vunpack.c.l.b16 %v1020
    %v1085 = vunpack.c.l.b16 %v1021
    %v1086 = vunpack.c.l.b16 %v1022
    %v1087 = vunpack.c.l.b16 %v1023
    %v1088 = vunpack.c.l.b16 %v1024
    %v1089 = vunpack.c.l.b16 %v1025
    %v1090 = vunpack.c.l.b16 %v1026
    %v1091 = vunpack.c.l.b16 %v1027
    %v1092 = vunpack.c.l.b16 %v1028
    %v1093 = vunpack.c.l.b16 %v1029
    %v1094 = vunpack.c.l.b16 %v1030
    %v1095 = vunpack.c.l.b16 %v1031
    %v1096 = vunpack.c.l.b16 %v1032
    %v1097 = vunpack.c.l.b16 %v1033
    %v1098 = vunpack.c.l.b16 %v1034
    %v1099 = vunpack.c.l.b16 %v1035
    %v1100 = vunpack.c.l.b16 %v1036
    %v1101 = vunpack.c.l.b16 %v1037
    %v1102 = vunpack.c.l.b16 %v1038
    %v1103 = vunpack.c.l.b16 %v1039
    %v1104 = vpack.c.b16 %v1073, %v1072
    %v1105 = vpack.c.b16 %v1075, %v1074
    %v1106 = vpack.c.b16 %v1077, %v1076
    %v1107 = vpack.c.b16 %v1079, %v1078
    %v1108 = vpack.c.b16 %v1081, %v1080
    %v1109 = vpack.c.b16 %v1083, %v1082
    %v1110 = vpack.c.b16 %v1085, %v1084
    %v1111 = vpack.c.b16 %v1087, %v1086
    %v1112 = vpack.c.b16 %v1089, %v1088
    %v1113 = vpack.c.b16 %v1091, %v1090
    %v1114 = vpack.c.b16 %v1093, %v1092
    %v1115 = vpack.c.b16 %v1095, %v1094
    %v1116 = vpack.c.b16 %v1097, %v1096
    %v1117 = vpack.c.b16 %v1099, %v1098
    %v1118 = vpack.c.b16 %v1101, %v1100
    %v1119 = vpack.c.b16 %v1103, %v1102
    %1136 = vmatprep.subr.bf16.mxu0 0
    %1137 = vmatpush1.bf16.msra.mxu0 %v1104
    %1138 = vmatprep.subr.bf16.mxu0 0
    %1139 = vmatpush1.bf16.msra.mxu0 %v1105
    %1140 = vmatprep.subr.bf16.mxu0 0
    %1141 = vmatpush1.bf16.msra.mxu0 %v1106
    %1142 = vmatprep.subr.bf16.mxu0 0
    %1143 = vmatpush1.bf16.msra.mxu0 %v1107
    %1144 = vmatprep.subr.bf16.mxu0 0
    %1145 = vmatpush1.bf16.msra.mxu0 %v1108
    %1146 = vmatprep.subr.bf16.mxu0 0
    %1147 = vmatpush1.bf16.msra.mxu0 %v1109
    %1148 = vmatprep.subr.bf16.mxu0 0
    %1149 = vmatpush1.bf16.msra.mxu0 %v1110
    %1150 = vmatprep.subr.bf16.mxu0 0
    %1151 = vmatpush1.bf16.msra.mxu0 %v1111
    %1152 = vmatprep.subr.bf16.mxu0 0
    %1153 = vmatpush1.bf16.msra.mxu0 %v1112
    %1154 = vmatprep.subr.bf16.mxu0 0
    %1155 = vmatpush1.bf16.msra.mxu0 %v1113
    %1156 = vmatprep.subr.bf16.mxu0 0
    %1157 = vmatpush1.bf16.msra.mxu0 %v1114
    %1158 = vmatprep.subr.bf16.mxu0 0
    %1159 = vmatpush1.bf16.msra.mxu0 %v1115
    %1160 = vmatprep.subr.bf16.mxu0 0
    %1161 = vmatpush1.bf16.msra.mxu0 %v1116
    %1162 = vmatprep.subr.bf16.mxu0 0
    %1163 = vmatpush1.bf16.msra.mxu0 %v1117
    %1164 = vmatprep.subr.bf16.mxu0 0
    %1165 = vmatpush1.bf16.msra.mxu0 %v1118
    %1166 = vmatprep.subr.bf16.mxu0 0
    %1167 = vmatpush1.bf16.msra.mxu0 %v1119
    %1168 = vmatprep.mubr.bf16.mxu0 %v1007
    %1169 = vmatmul.mubr.bf16.gmra.mrb[0].mxu0 %v1006
    %v1170 = vpop.f32.mrb[0].mxu0
    %v1171 = vadd.f32 0.0, %v1170
    %v1172 = vpop.f32.mrb[0].mxu0
    %v1173 = vpop.f32.mrb[0].mxu0
    %v1174 = vpop.f32.mrb[0].mxu0
    %1175 = vdwg.mxu0
    %v1176 = vpack.c.bf16 %v1171, %v1171
    %v1177 = vld [vmem:[%s4] sm:$0xff]
    %v1178 = vld [vmem:[%s4 + $0x8] sm:$0xff]
    %v1179 = vld [vmem:[%s4 + $0x10] sm:$0xff]
    %v1180 = vld [vmem:[%s4 + $0x18] sm:$0xff]
    %v1181 = vld [vmem:[%s5] sm:$0x3]
    %v1183 = vlaneseq
    %v1184 = vshrl.u32 %v1183, 7
    %v1185 = vsub.s32 0, %v1184
    %v1186 = vrot.slane %v1181, %v1185
    %v1187 = vlaneseq
    %v1188 = vshrl.u32 %v1187, 7
    %v1189 = vsub.s32 1, %v1188
    %v1190 = vrot.slane %v1181, %v1189
    %v1197 = vunpack.c.l.b16 %v1177
    %v1198 = vunpack.c.h.b16 %v1177
    %v1199 = vunpack.c.l.b16 %v1178
    %v1200 = vunpack.c.h.b16 %v1178
    %v1201 = vunpack.c.l.b16 %v1179
    %v1202 = vunpack.c.h.b16 %v1179
    %v1203 = vunpack.c.l.b16 %v1180
    %v1204 = vunpack.c.h.b16 %v1180
    %v1205 = vpack.c.b16 %v1199, %v1197
    %v1206 = vpack.c.b16 %v1200, %v1198
    %v1207 = vpack.c.b16 %v1203, %v1201
    %v1208 = vpack.c.b16 %v1204, %v1202
    %vm1213 = vcmask 261120
    %v1215 = vsel %vm1213, %v1176, 0
    %1217 = vmatprep.subr.bf16.mxu0 %v1206
    %1218 = vmatpush1.bf16.msra.mxu0 %v1205
    %1219 = vmatprep.subr.bf16.mxu0 %v1208
    %1220 = vmatpush1.bf16.msra.mxu0 %v1207
    %1221 = vmatprep.subr.bf16.mxu0 0
    %1222 = vmatpush1.bf16.msra.mxu0 0
    %1223 = vmatprep.subr.bf16.mxu0 0
    %1224 = vmatpush1.bf16.msra.mxu0 0
    %1225 = vmatprep.subr.bf16.mxu0 0
    %1226 = vmatpush1.bf16.msra.mxu0 0
    %1227 = vmatprep.subr.bf16.mxu0 0
    %1228 = vmatpush1.bf16.msra.mxu0 0
    %1229 = vmatprep.subr.bf16.mxu0 0
    %1230 = vmatpush1.bf16.msra.mxu0 0
    %1231 = vmatprep.subr.bf16.mxu0 0
    %1232 = vmatpush1.bf16.msra.mxu0 0
    %1233 = vmatprep.subr.bf16.mxu0 0
    %1234 = vmatpush1.bf16.msra.mxu0 0
    %1235 = vmatprep.subr.bf16.mxu0 0
    %1236 = vmatpush1.bf16.msra.mxu0 0
    %1237 = vmatprep.subr.bf16.mxu0 0
    %1238 = vmatpush1.bf16.msra.mxu0 0
    %1239 = vmatprep.subr.bf16.mxu0 0
    %1240 = vmatpush1.bf16.msra.mxu0 0
    %1241 = vmatprep.subr.bf16.mxu0 0
    %1242 = vmatpush1.bf16.msra.mxu0 0
    %1243 = vmatprep.subr.bf16.mxu0 0
    %1244 = vmatpush1.bf16.msra.mxu0 0
    %1245 = vmatprep.subr.bf16.mxu0 0
    %1246 = vmatpush1.bf16.msra.mxu0 0
    %1247 = vmatprep.subr.bf16.mxu0 0
    %1248 = vmatpush1.bf16.msra.mxu0 0
    %1249 = vmatprep.mubr.bf16.mxu0 0
    %1250 = vmatmul.mubr.bf16.gmra.mrb[0].mxu0 %v1215
    %v1251 = vpop.f32.mrb[0].mxu0
    %v1252 = vadd.f32 %v1186, %v1251
    %v1253 = vpop.f32.mrb[0].mxu0
    %v1254 = vadd.f32 %v1190, %v1253
    %v1255 = vpop.f32.mrb[0].mxu0
    %v1256 = vpop.f32.mrb[0].mxu0
    %1257 = vdwg.mxu0
    %v1258 = vmax.f32 %v1252, 0.0
    %v1259 = vmax.f32 %v1254, 0.0
    %v1260 = vpack.c.bf16 %v1258, %v1258
    %v1261 = vpack.c.bf16 %v1259, %v1259
    %v1262 = vld [vmem:[%s6] sm:$0xf]
    %v1263 = vld [vmem:[%s6 + $0x4] sm:$0xf]
    %v1264 = vld [vmem:[%s6 + $0x8] sm:$0xf]
    %v1265 = vld [vmem:[%s6 + $0xc] sm:$0xf]
    %v1266 = vld [vmem:[%s6 + $0x10] sm:$0xf]
    %v1267 = vld [vmem:[%s6 + $0x14] sm:$0xf]
    %v1268 = vld [vmem:[%s6 + $0x18] sm:$0xf]
    %v1269 = vld [vmem:[%s6 + $0x1c] sm:$0xf]
    %v1270 = vld [vmem:[%s6 + $0x20] sm:$0xf]
    %v1271 = vld [vmem:[%s6 + $0x24] sm:$0xf]
    %v1272 = vld [vmem:[%s6 + $0x28] sm:$0xf]
    %v1273 = vld [vmem:[%s6 + $0x2c] sm:$0xf]
    %v1274 = vld [vmem:[%s6 + $0x30] sm:$0xf]
    %v1275 = vld [vmem:[%s6 + $0x34] sm:$0xf]
    %v1276 = vld [vmem:[%s6 + $0x38] sm:$0xf]
    %v1277 = vld [vmem:[%s6 + $0x3c] sm:$0xf]
    %v1278 = vld [vmem:[%s6 + $0x40] sm:$0xf]
    %v1279 = vld [vmem:[%s6 + $0x44] sm:$0xf]
    %v1280 = vld [vmem:[%s6 + $0x48] sm:$0xf]
    %v1281 = vld [vmem:[%s6 + $0x4c] sm:$0xf]
    %v1282 = vld [vmem:[%s6 + $0x50] sm:$0xf]
    %v1283 = vld [vmem:[%s6 + $0x54] sm:$0xf]
    %v1284 = vld [vmem:[%s6 + $0x58] sm:$0xf]
    %v1285 = vld [vmem:[%s6 + $0x5c] sm:$0xf]
    %v1286 = vld [vmem:[%s6 + $0x60] sm:$0xf]
    %v1287 = vld [vmem:[%s6 + $0x64] sm:$0xf]
    %v1288 = vld [vmem:[%s6 + $0x68] sm:$0xf]
    %v1289 = vld [vmem:[%s6 + $0x6c] sm:$0xf]
    %v1290 = vld [vmem:[%s6 + $0x70] sm:$0xf]
    %v1291 = vld [vmem:[%s6 + $0x74] sm:$0xf]
    %v1292 = vld [vmem:[%s6 + $0x78] sm:$0xf]
    %v1293 = vld [vmem:[%s6 + $0x7c] sm:$0xf]
    %v1294 = vld [vmem:[%s7] sm:$0x1]
    %v1296 = vlaneseq
    %v1297 = vshrl.u32 %v1296, 7
    %v1298 = vsub.s32 0, %v1297
    %v1299 = vrot.slane %v1294, %v1298
    %v1333 = vunpack.c.l.b16 %v1262
    %v1334 = vunpack.c.l.b16 %v1263
    %v1335 = vunpack.c.l.b16 %v1264
    %v1336 = vunpack.c.l.b16 %v1265
    %v1337 = vunpack.c.l.b16 %v1266
    %v1338 = vunpack.c.l.b16 %v1267
    %v1339 = vunpack.c.l.b16 %v1268
    %v1340 = vunpack.c.l.b16 %v1269
    %v1341 = vunpack.c.l.b16 %v1270
    %v1342 = vunpack.c.l.b16 %v1271
    %v1343 = vunpack.c.l.b16 %v1272
    %v1344 = vunpack.c.l.b16 %v1273
    %v1345 = vunpack.c.l.b16 %v1274
    %v1346 = vunpack.c.l.b16 %v1275
    %v1347 = vunpack.c.l.b16 %v1276
    %v1348 = vunpack.c.l.b16 %v1277
    %v1349 = vunpack.c.l.b16 %v1278
    %v1350 = vunpack.c.l.b16 %v1279
    %v1351 = vunpack.c.l.b16 %v1280
    %v1352 = vunpack.c.l.b16 %v1281
    %v1353 = vunpack.c.l.b16 %v1282
    %v1354 = vunpack.c.l.b16 %v1283
    %v1355 = vunpack.c.l.b16 %v1284
    %v1356 = vunpack.c.l.b16 %v1285
    %v1357 = vunpack.c.l.b16 %v1286
    %v1358 = vunpack.c.l.b16 %v1287
    %v1359 = vunpack.c.l.b16 %v1288
    %v1360 = vunpack.c.l.b16 %v1289
    %v1361 = vunpack.c.l.b16 %v1290
    %v1362 = vunpack.c.l.b16 %v1291
    %v1363 = vunpack.c.l.b16 %v1292
    %v1364 = vunpack.c.l.b16 %v1293
    %v1365 = vpack.c.b16 %v1334, %v1333
    %v1366 = vpack.c.b16 %v1336, %v1335
    %v1367 = vpack.c.b16 %v1338, %v1337
    %v1368 = vpack.c.b16 %v1340, %v1339
    %v1369 = vpack.c.b16 %v1342, %v1341
    %v1370 = vpack.c.b16 %v1344, %v1343
    %v1371 = vpack.c.b16 %v1346, %v1345
    %v1372 = vpack.c.b16 %v1348, %v1347
    %v1373 = vpack.c.b16 %v1350, %v1349
    %v1374 = vpack.c.b16 %v1352, %v1351
    %v1375 = vpack.c.b16 %v1354, %v1353
    %v1376 = vpack.c.b16 %v1356, %v1355
    %v1377 = vpack.c.b16 %v1358, %v1357
    %v1378 = vpack.c.b16 %v1360, %v1359
    %v1379 = vpack.c.b16 %v1362, %v1361
    %v1380 = vpack.c.b16 %v1364, %v1363
    %1397 = vmatprep.subr.bf16.mxu0 0
    %1398 = vmatpush1.bf16.msra.mxu0 %v1365
    %1399 = vmatprep.subr.bf16.mxu0 0
    %1400 = vmatpush1.bf16.msra.mxu0 %v1366
    %1401 = vmatprep.subr.bf16.mxu0 0
    %1402 = vmatpush1.bf16.msra.mxu0 %v1367
    %1403 = vmatprep.subr.bf16.mxu0 0
    %1404 = vmatpush1.bf16.msra.mxu0 %v1368
    %1405 = vmatprep.subr.bf16.mxu0 0
    %1406 = vmatpush1.bf16.msra.mxu0 %v1369
    %1407 = vmatprep.subr.bf16.mxu0 0
    %1408 = vmatpush1.bf16.msra.mxu0 %v1370
    %1409 = vmatprep.subr.bf16.mxu0 0
    %1410 = vmatpush1.bf16.msra.mxu0 %v1371
    %1411 = vmatprep.subr.bf16.mxu0 0
    %1412 = vmatpush1.bf16.msra.mxu0 %v1372
    %1413 = vmatprep.subr.bf16.mxu0 0
    %1414 = vmatpush1.bf16.msra.mxu0 %v1373
    %1415 = vmatprep.subr.bf16.mxu0 0
    %1416 = vmatpush1.bf16.msra.mxu0 %v1374
    %1417 = vmatprep.subr.bf16.mxu0 0
    %1418 = vmatpush1.bf16.msra.mxu0 %v1375
    %1419 = vmatprep.subr.bf16.mxu0 0
    %1420 = vmatpush1.bf16.msra.mxu0 %v1376
    %1421 = vmatprep.subr.bf16.mxu0 0
    %1422 = vmatpush1.bf16.msra.mxu0 %v1377
    %1423 = vmatprep.subr.bf16.mxu0 0
    %1424 = vmatpush1.bf16.msra.mxu0 %v1378
    %1425 = vmatprep.subr.bf16.mxu0 0
    %1426 = vmatpush1.bf16.msra.mxu0 %v1379
    %1427 = vmatprep.subr.bf16.mxu0 0
    %1428 = vmatpush1.bf16.msra.mxu0 %v1380
    %1429 = vmatprep.mubr.bf16.mxu0 %v1261
    %1430 = vmatmul.mubr.bf16.gmra.mrb[0].mxu0 %v1260
    %v1431 = vpop.f32.mrb[0].mxu0
    %v1432 = vadd.f32 %v1299, %v1431
    %v1433 = vpop.f32.mrb[0].mxu0
    %v1434 = vpop.f32.mrb[0].mxu0
    %v1435 = vpop.f32.mrb[0].mxu0
    %1436 = vdwg.mxu0
    %1437 = vst [vmem:[%s8] sm:$0xff] %v1432
    // Predicated region
    $region38: #{neural_network_forward.1} parent=1 // pred_check
      _
    $region39: #{neural_network_forward.1} parent=1 // pred_check_branch
      %1439 = sbr.rel (0) target = $region41
    $region40: #{neural_network_forward.1} parent=1 // pred_region
      _
    $region41: #{neural_network_forward.1} parent=1 // pred_fallthru
      _
    // Predicated region
    $region42: #{neural_network_forward.1} parent=1 // pred_check
      _
    $region43: #{neural_network_forward.1} parent=1 // pred_check_branch
      %1441 = sbr.rel (0) target = $region45
    $region44: #{neural_network_forward.1} parent=1 // pred_region
      _
    $region45: #{neural_network_forward.1} parent=1 // pred_fallthru
      _
    %1442 = vsyncpa [#allocation3], 1

</llo_original>
